<compile_context>
chip_gen: v7x
topology: tpu7x:2x2x1
jax: 0.10.0
libtpu: 0.0.40
codegen_flags: <defaults>
</compile_context>

<pallas_src>
import jax
import jax.numpy as jnp
from jax.experimental import pallas as pl
from jax.experimental.pallas import tpu as pltpu


def mlp_kernel(x_ref, w1_ref, b1_ref, w2_ref, b2_ref, o_ref):
    # Layer 1 on the MXU: (tb, F) @ (F, H) -> (tb, H), f32 accumulation.
    xb = x_ref[...].astype(jnp.bfloat16)                    # cast on VPU (hidden)
    h = jnp.dot(xb, w1_ref[...], preferred_element_type=jnp.float32)
    h = jnp.maximum(h + b1_ref[...], 0.0)                   # bias + ReLU, f32 VPU
    # Layer 2 (H -> 1): exact f32 multiply + cross-lane reduce on the XLU.
    z = jnp.sum(h * w2_ref[...], axis=1, keepdims=True) + b2_ref[0]
    # Sigmoid: exp on the EUP, exact reciprocal (epilogue is hidden under DMA).
    o_ref[...] = pl.reciprocal(1.0 + jnp.exp(-z), approx=False)


def _pick_tb(batch):
    """Batch tile (output sublanes).  Large tiles amortize the ~0.35 us fixed
    per-grid-step overhead; keep an even number (>= 2) of tiles when the batch
    is big enough so v7x's two TensorCores both get work."""
    cap = 2048
    b8 = -(-batch // 8) * 8            # round batch up to a sublane multiple
    if b8 <= 16:
        return b8                      # too small to split across cores
    n = max(2, -(-b8 // cap))          # at least 2 grid tiles
    n += n % 2                         # even tile count for 2 TCs (v7x)
    return -(-b8 // (n * 8)) * 8       # per-tile batch, multiple of 8


def prepare_params(w1, b1, w2, b2):
    """One-time prep of torch-layout params (hoisted out of the forward)."""
    w1t = w1.astype(jnp.bfloat16).T                   # (6W, W)  VMEM-resident
    b1r = b1.reshape(1, -1).astype(jnp.float32)       # (1, W)
    w2r = w2.reshape(1, -1).astype(jnp.float32)       # (1, W)   exact f32 layer 2
    b2s = b2.reshape(1).astype(jnp.float32)           # SMEM scalar
    return w1t, b1r, w2r, b2s


@jax.jit
def mlp_forward(x, w1t, b1r, w2r, b2s):
    """x: (B, 6, W) f32; params from prepare_params().  Returns (B, 1) f32."""
    B = x.shape[0]
    F = x.shape[1] * x.shape[2]                       # 6*W
    H = w1t.shape[1]                                  # hidden width == W
    x_flat = x.reshape(B, F)                          # nn.Flatten (row-major)

    tb = _pick_tb(B)
    n_tiles = pl.cdiv(B, tb)
    B_pad = n_tiles * tb
    x_pad = jnp.pad(x_flat, ((0, B_pad - B), (0, 0)))  # no-op when B_pad == B

    # VMEM: double-buffered x tile (2 * tb * F * 4B <= ~3 MiB at tb=2048) plus
    # tiny resident weights — far below every generation's limit.
    out = pl.pallas_call(
        mlp_kernel,
        out_shape=jax.ShapeDtypeStruct((B_pad, 1), jnp.float32),
        grid_spec=pltpu.PrefetchScalarGridSpec(
            num_scalar_prefetch=0,
            grid=(n_tiles,),
            in_specs=[
                pl.BlockSpec((tb, F), lambda i: (i, 0)),        # x   : streamed
                pl.BlockSpec((F, H), lambda i: (0, 0)),         # W1^T: resident
                pl.BlockSpec((1, H), lambda i: (0, 0)),         # b1  : resident
                pl.BlockSpec((1, H), lambda i: (0, 0)),         # w2  : resident
                pl.BlockSpec(memory_space=pltpu.MemorySpace.SMEM),  # b2 scalar
            ],
            out_specs=pl.BlockSpec((tb, 1), lambda i: (i, 0)),
        ),
        compiler_params=pltpu.CompilerParams(
            dimension_semantics=("parallel",),   # v7x: shard batch tiles on 2 TCs
            vmem_limit_bytes=32 * 1024 * 1024,
        ),
    )(x_pad, w1t, b1r, w2r, b2s)

    return out[:B]                                     # drop batch padding


def init_params(key, window_size):
    """Deterministic init mimicking nn.Linear defaults, PyTorch weight layout."""
    in1 = 6 * window_size
    k1, k2, k3, k4 = jax.random.split(key, 4)
    lim1 = 1.0 / jnp.sqrt(in1)
    lim2 = 1.0 / jnp.sqrt(window_size)
    w1 = jax.random.uniform(k1, (window_size, in1), jnp.float32, -lim1, lim1)
    b1 = jax.random.uniform(k2, (window_size,), jnp.float32, -lim1, lim1)
    w2 = jax.random.uniform(k3, (1, window_size), jnp.float32, -lim2, lim2)
    b2 = jax.random.uniform(k4, (1,), jnp.float32, -lim2, lim2)
    return w1, b1, w2, b2


if __name__ == "__main__":
    window_size = 32
    batch = 8

    key = jax.random.PRNGKey(0)
    kx, kp = jax.random.split(key)
    x = jax.random.normal(kx, (batch, 6, window_size), jnp.float32)
    w1, b1, w2, b2 = init_params(kp, window_size)

    params = prepare_params(w1, b1, w2, b2)            # hoisted, one-time prep
    out = mlp_forward(x, *params)
    out = jax.block_until_ready(out)

    # Pure-JAX reference with the same bf16-cast layer-1 operands (f32 accum),
    # exact f32 layer 2 and exact sigmoid.
    x_flat = x.reshape(batch, -1)
    xb = x_flat.astype(jnp.bfloat16).astype(jnp.float32)
    w1b = w1.astype(jnp.bfloat16).astype(jnp.float32)
    h = jnp.maximum(xb @ w1b.T + b1[None, :], 0.0)
    ref = jax.nn.sigmoid(h @ w2.T + b2[None, :])

    assert out.shape == (batch, 1)
    # atol covers bf16 rounding / MXU accumulation-order differences in layer 1.
    assert jnp.allclose(out, ref, atol=2e-3, rtol=0.0), float(jnp.abs(out - ref).max())

    print("KERNEL_OK")
</pallas_src>

<mosaic_0001>
module attributes {stable_mosaic.version = 11 : i64} {
  func.func @mlp_kernel(%arg0: i32, %arg1: memref<8x192xf32, #tpu.memory_space<vmem>>, %arg2: memref<192x32xbf16, #tpu.memory_space<vmem>>, %arg3: memref<1x32xf32, #tpu.memory_space<vmem>>, %arg4: memref<1x32xf32, #tpu.memory_space<vmem>>, %arg5: memref<1xf32, #tpu.memory_space<smem>>, %arg6: memref<8x1xf32, #tpu.memory_space<vmem>>) attributes {dimension_semantics = [#tpu.dimension_semantics<parallel>], iteration_bounds = array<i64: 1>, scalar_prefetch = 0 : i64, scratch_operands = 0 : i64, tpu.core_type = #tpu.core_type<tc>, window_params = [{transform_indices = @transform_0, window_bounds = array<i64: 8, 192>}, {pipeline_mode = #tpu.pipeline_mode<synchronous>, transform_indices = @transform_1, window_bounds = array<i64: 192, 32>}, {pipeline_mode = #tpu.pipeline_mode<synchronous>, transform_indices = @transform_2, window_bounds = array<i64: 1, 32>}, {pipeline_mode = #tpu.pipeline_mode<synchronous>, transform_indices = @transform_3, window_bounds = array<i64: 1, 32>}, {transform_indices = @transform_4, window_bounds = array<i64: 1>}, {transform_indices = @transform_5, window_bounds = array<i64: 8, 1>}]} {
    %c0 = arith.constant 0 : index
    %c0_0 = arith.constant 0 : index
    %0 = vector.load %arg1[%c0, %c0_0] : memref<8x192xf32, #tpu.memory_space<vmem>>, vector<8x192xf32>
    %1 = arith.truncf %0 : vector<8x192xf32> to vector<8x192xbf16>
    %c0_1 = arith.constant 0 : index
    %c0_2 = arith.constant 0 : index
    %2 = vector.load %arg2[%c0_1, %c0_2] : memref<192x32xbf16, #tpu.memory_space<vmem>>, vector<192x32xbf16>
    %cst = arith.constant dense<0.000000e+00> : vector<8x32xf32>
    %3 = tpu.matmul %1, %2, %cst {dimension_numbers = #tpu.dot_dimension_numbers<[1], [0], [0], [1], [0, 0, 1, 1], [], []>} : vector<8x192xbf16>, vector<192x32xbf16>, vector<8x32xf32> -> vector<8x32xf32>
    %c0_3 = arith.constant 0 : index
    %c0_4 = arith.constant 0 : index
    %4 = vector.load %arg3[%c0_3, %c0_4] : memref<1x32xf32, #tpu.memory_space<vmem>>, vector<1x32xf32>
    %5 = vector.broadcast %4 : vector<1x32xf32> to vector<8x32xf32>
    %6 = arith.addf %3, %5 : vector<8x32xf32>
    %cst_5 = arith.constant 0.000000e+00 : f32
    %7 = vector.broadcast %cst_5 : f32 to vector<8x32xf32>
    %8 = arith.maximumf %6, %7 : vector<8x32xf32>
    %c0_6 = arith.constant 0 : index
    %c0_7 = arith.constant 0 : index
    %9 = vector.load %arg4[%c0_6, %c0_7] : memref<1x32xf32, #tpu.memory_space<vmem>>, vector<1x32xf32>
    %10 = vector.broadcast %9 : vector<1x32xf32> to vector<8x32xf32>
    %11 = arith.mulf %8, %10 : vector<8x32xf32>
    %cst_8 = arith.constant dense<0.000000e+00> : vector<8xf32>
    %12 = vector.multi_reduction <add>, %11, %cst_8 [1] : vector<8x32xf32> to vector<8xf32>
    %13 = vector.shape_cast %12 : vector<8xf32> to vector<8x1xf32>
    %c0_9 = arith.constant 0 : index
    %14 = memref.load %arg5[%c0_9] : memref<1xf32, #tpu.memory_space<smem>>
    %15 = vector.broadcast %14 : f32 to vector<8x1xf32>
    %16 = arith.addf %13, %15 : vector<8x1xf32>
    %cst_10 = arith.constant 0.000000e+00 : f32
    %17 = vector.broadcast %cst_10 : f32 to vector<8x1xf32>
    %18 = arith.subf %17, %16 : vector<8x1xf32>
    %19 = math.exp %18 : vector<8x1xf32>
    %cst_11 = arith.constant 1.000000e+00 : f32
    %20 = vector.broadcast %cst_11 : f32 to vector<8x1xf32>
    %21 = arith.addf %20, %19 : vector<8x1xf32>
    %22 = tpu.reciprocal %21 : vector<8x1xf32> -> vector<8x1xf32>
    %c0_12 = arith.constant 0 : index
    %c0_13 = arith.constant 0 : index
    %23 = vector.load %arg6[%c0_12, %c0_13] : memref<8x1xf32, #tpu.memory_space<vmem>>, vector<8x1xf32>
    tpu.vector_store %arg6[%c0_12, %c0_13], %22 {strides = array<i32>} : memref<8x1xf32, #tpu.memory_space<vmem>>, vector<8x1xf32>,
    return
  }
  func.func @transform_0(%arg0: i32) -> (i32, i32) {
    %c0_i32 = arith.constant 0 : i32
    %c0_i32_0 = arith.constant 0 : i32
    return %arg0, %c0_i32 : i32, i32
  }
  func.func @transform_1(%arg0: i32) -> (i32, i32) {
    %c0_i32 = arith.constant 0 : i32
    %c0_i32_0 = arith.constant 0 : i32
    %c0_i32_1 = arith.constant 0 : i32
    return %c0_i32, %c0_i32_0 : i32, i32
  }
  func.func @transform_2(%arg0: i32) -> (i32, i32) {
    %c0_i32 = arith.constant 0 : i32
    %c0_i32_0 = arith.constant 0 : i32
    %c0_i32_1 = arith.constant 0 : i32
    return %c0_i32, %c0_i32_0 : i32, i32
  }
  func.func @transform_3(%arg0: i32) -> (i32, i32) {
    %c0_i32 = arith.constant 0 : i32
    %c0_i32_0 = arith.constant 0 : i32
    %c0_i32_1 = arith.constant 0 : i32
    return %c0_i32, %c0_i32_0 : i32, i32
  }
  func.func @transform_4(%arg0: i32) -> i32 {
    %c0_i32 = arith.constant 0 : i32
    %c0_i32_0 = arith.constant 0 : i32
    return %c0_i32 : i32
  }
  func.func @transform_5(%arg0: i32) -> (i32, i32) {
    %c0_i32 = arith.constant 0 : i32
    %c0_i32_0 = arith.constant 0 : i32
    return %arg0, %c0_i32 : i32, i32
  }
}

</mosaic_0001>

<llo_original>
// kernel: mlp_forward.1
$region0: #{mlp_forward.1}
  #allocation0 [shape = 'u32[]', space=smem, size = 0x4, offset = 0x4, fixed_abs, tag = 'smem constant byte address 0x4 - core index']
  #allocation1 [shape = 'u32[144,128]{1,0:T(1,128)}', space=vmem, size = 0x12000, scoped, tag = 'internal scratch']
  #allocation2 [shape = 'f32[1]{0:T(128)S(6)}', space=smem, size = 0x200, scoped, tag = 'scoped memory for mlp_forward.1']
  %s0 = inlined_call_operand.vmem [shape: f32[8,192], index: 0, kind: input, shape index: {}]
  %s1 = inlined_call_operand.vmem [shape: bf16[192,32], index: 1, kind: input, shape index: {}]
  %s2 = inlined_call_operand.vmem [shape: f32[1,32], index: 2, kind: input, shape index: {}]
  %s3 = inlined_call_operand.vmem [shape: f32[1,32], index: 3, kind: input, shape index: {}]
  %s4 = inlined_call_operand.<no memory space> [shape: f32[1], index: 4, kind: input, shape index: {}]
  %s5 = inlined_call_operand.vmem [shape: f32[8,1], index: 5, kind: output, shape index: {}]
  %s6 = sld [smem:[#allocation0]]
  $region30: #{mlp_forward.1} parent=0
    _
  %s8 = ssub.s32 1, %s6
  %s9 = scalar_select 0, %s8, %s6
  %10 = sst [smem:[#allocation2]] %s4
  // Predicated region
  $region2: #{mlp_forward.1} parent=0 // pred_check
    _
  $region3: #{mlp_forward.1} parent=0 // pred_check_branch
    %12 = sbr.rel (0) target = $region5
  $region4: #{mlp_forward.1} parent=0 // pred_region
    _
  $region5: #{mlp_forward.1} parent=0 // pred_fallthru
    _
  // Predicated region
  $region6: #{mlp_forward.1} parent=0 // pred_check
    _
  $region7: #{mlp_forward.1} parent=0 // pred_check_branch
    %14 = sbr.rel (0) target = $region9
  $region8: #{mlp_forward.1} parent=0 // pred_region
    _
  $region9: #{mlp_forward.1} parent=0 // pred_fallthru
    _
  // Predicated region
  $region10: #{mlp_forward.1} parent=0 // pred_check
    _
  $region11: #{mlp_forward.1} parent=0 // pred_check_branch
    %16 = sbr.rel (0) target = $region13
  $region12: #{mlp_forward.1} parent=0 // pred_region
    _
  $region13: #{mlp_forward.1} parent=0 // pred_fallthru
    _
  // Predicated region
  $region14: #{mlp_forward.1} parent=0 // pred_check
    _
  $region15: #{mlp_forward.1} parent=0 // pred_check_branch
    %18 = sbr.rel (0) target = $region17
  $region16: #{mlp_forward.1} parent=0 // pred_region
    _
  $region17: #{mlp_forward.1} parent=0 // pred_fallthru
    _
  // Predicated region
  $region18: #{mlp_forward.1} parent=0 // pred_check
    _
  $region19: #{mlp_forward.1} parent=0 // pred_check_branch
    %20 = sbr.rel (0) target = $region21
  $region20: #{mlp_forward.1} parent=0 // pred_region
    _
  $region21: #{mlp_forward.1} parent=0 // pred_fallthru
    _
  %v22 = vld [vmem:[%s0] sm:$0xff]
  %v23 = vld [vmem:[%s0 + $0x8] sm:$0xff]
  %v24 = vpack.c.bf16 %v22, %v22
  %v25 = vpack.c.bf16 %v23, %v23
  %v26 = vld [vmem:[%s1] sm:$0xf]
  %v27 = vld [vmem:[%s1 + $0x4] sm:$0xf]
  %v28 = vld [vmem:[%s1 + $0x8] sm:$0xf]
  %v29 = vld [vmem:[%s1 + $0xc] sm:$0xf]
  %v30 = vld [vmem:[%s1 + $0x10] sm:$0xf]
  %v31 = vld [vmem:[%s1 + $0x14] sm:$0xf]
  %v32 = vld [vmem:[%s1 + $0x18] sm:$0xf]
  %v33 = vld [vmem:[%s1 + $0x1c] sm:$0xf]
  %v34 = vld [vmem:[%s1 + $0x20] sm:$0xf]
  %v35 = vld [vmem:[%s1 + $0x24] sm:$0xf]
  %v36 = vld [vmem:[%s1 + $0x28] sm:$0xf]
  %v37 = vld [vmem:[%s1 + $0x2c] sm:$0xf]
  %v38 = vld [vmem:[%s1 + $0x30] sm:$0xf]
  %v39 = vld [vmem:[%s1 + $0x34] sm:$0xf]
  %v40 = vld [vmem:[%s1 + $0x38] sm:$0xf]
  %v41 = vld [vmem:[%s1 + $0x3c] sm:$0xf]
  %v42 = vld [vmem:[%s1 + $0x40] sm:$0xf]
  %v43 = vld [vmem:[%s1 + $0x44] sm:$0xf]
  %v44 = vld [vmem:[%s1 + $0x48] sm:$0xf]
  %v45 = vld [vmem:[%s1 + $0x4c] sm:$0xf]
  %v46 = vld [vmem:[%s1 + $0x50] sm:$0xf]
  %v47 = vld [vmem:[%s1 + $0x54] sm:$0xf]
  %v48 = vld [vmem:[%s1 + $0x58] sm:$0xf]
  %v49 = vld [vmem:[%s1 + $0x5c] sm:$0xf]
  %v50 = vld [vmem:[%s2] sm:$0x1]
  %v52 = vlaneseq
  %v53 = vshrl.u32 %v52, 7
  %v54 = vsub.s32 0, %v53
  %v55 = vrot.slane %v50, %v54
  %v81 = vunpack.c.l.b16 %v26
  %v82 = vunpack.c.l.b16 %v27
  %v83 = vunpack.c.l.b16 %v28
  %v84 = vunpack.c.l.b16 %v29
  %v85 = vunpack.c.l.b16 %v30
  %v86 = vunpack.c.l.b16 %v31
  %v87 = vunpack.c.l.b16 %v32
  %v88 = vunpack.c.l.b16 %v33
  %v89 = vunpack.c.l.b16 %v34
  %v90 = vunpack.c.l.b16 %v35
  %v91 = vunpack.c.l.b16 %v36
  %v92 = vunpack.c.l.b16 %v37
  %v93 = vunpack.c.l.b16 %v38
  %v94 = vunpack.c.l.b16 %v39
  %v95 = vunpack.c.l.b16 %v40
  %v96 = vunpack.c.l.b16 %v41
  %v97 = vunpack.c.l.b16 %v42
  %v98 = vunpack.c.l.b16 %v43
  %v99 = vunpack.c.l.b16 %v44
  %v100 = vunpack.c.l.b16 %v45
  %v101 = vunpack.c.l.b16 %v46
  %v102 = vunpack.c.l.b16 %v47
  %v103 = vunpack.c.l.b16 %v48
  %v104 = vunpack.c.l.b16 %v49
  %v105 = vpack.c.b16 %v82, %v81
  %v106 = vpack.c.b16 %v84, %v83
  %v107 = vpack.c.b16 %v86, %v85
  %v108 = vpack.c.b16 %v88, %v87
  %v109 = vpack.c.b16 %v90, %v89
  %v110 = vpack.c.b16 %v92, %v91
  %v111 = vpack.c.b16 %v94, %v93
  %v112 = vpack.c.b16 %v96, %v95
  %v113 = vpack.c.b16 %v98, %v97
  %v114 = vpack.c.b16 %v100, %v99
  %v115 = vpack.c.b16 %v102, %v101
  %v116 = vpack.c.b16 %v104, %v103
  %vm129 = vcmask 523264
  %v131 = vsel %vm129, %v25, 0
  %133 = vmatprep.subr.bf16.mxu0 0
  %134 = vmatpush1.bf16.msra.mxu0 %v105
  %135 = vmatprep.subr.bf16.mxu0 0
  %136 = vmatpush1.bf16.msra.mxu0 %v106
  %137 = vmatprep.subr.bf16.mxu0 0
  %138 = vmatpush1.bf16.msra.mxu0 %v107
  %139 = vmatprep.subr.bf16.mxu0 0
  %140 = vmatpush1.bf16.msra.mxu0 %v108
  %141 = vmatprep.subr.bf16.mxu0 0
  %142 = vmatpush1.bf16.msra.mxu0 %v109
  %143 = vmatprep.subr.bf16.mxu0 0
  %144 = vmatpush1.bf16.msra.mxu0 %v110
  %145 = vmatprep.subr.bf16.mxu0 0
  %146 = vmatpush1.bf16.msra.mxu0 %v111
  %147 = vmatprep.subr.bf16.mxu0 0
  %148 = vmatpush1.bf16.msra.mxu0 %v112
  %149 = vmatprep.subr.bf16.mxu0 0
  %150 = vmatpush1.bf16.msra.mxu0 %v113
  %151 = vmatprep.subr.bf16.mxu0 0
  %152 = vmatpush1.bf16.msra.mxu0 %v114
  %153 = vmatprep.subr.bf16.mxu0 0
  %154 = vmatpush1.bf16.msra.mxu0 %v115
  %155 = vmatprep.subr.bf16.mxu0 0
  %156 = vmatpush1.bf16.msra.mxu0 %v116
  %157 = vmatprep.subr.bf16.mxu0 0
  %158 = vmatpush1.bf16.msra.mxu0 0
  %159 = vmatprep.subr.bf16.mxu0 0
  %160 = vmatpush1.bf16.msra.mxu0 0
  %161 = vmatprep.subr.bf16.mxu0 0
  %162 = vmatpush1.bf16.msra.mxu0 0
  %163 = vmatprep.subr.bf16.mxu0 0
  %164 = vmatpush1.bf16.msra.mxu0 0
  %165 = vmatprep.mubr.bf16.mxu0 %v131
  %166 = vmatmul.mubr.bf16.gmra.mrb[0].mxu0 %v24
  %v167 = vpop.f32.mrb[0].mxu0
  %v168 = vadd.f32 %v55, %v167
  %v169 = vpop.f32.mrb[0].mxu0
  %v170 = vpop.f32.mrb[0].mxu0
  %v171 = vpop.f32.mrb[0].mxu0
  %172 = vdwg.mxu0
  %v173 = vmax.f32 %v168, 0.0
  %v174 = vld [vmem:[%s3] sm:$0x1]
  %v176 = vlaneseq
  %v177 = vshrl.u32 %v176, 7
  %v178 = vsub.s32 0, %v177
  %v179 = vrot.slane %v174, %v178
  %v181 = vmul.f32 %v173, %v179
  %vm182 = vcmask 261120
  %v183 = vsel %vm182, %v181, 0.0
  %184 = vadd.xlane.f32.xlu0 %v183
  %v185 = vpop.xlane.xlu0 %184
  %s186 = sld [smem:[#allocation2]]
  %v187 = vstv %s186
  %v188 = vadd.f32 %v185, %v187
  %v189 = vsub.f32 0.0, %v188
  %v190 = vmul.f32 %v189, 1.442695
  %v191 = vpow.pop %v190
  %v192 = vadd.f32 %v191, 1.0
  %v193 = vrcp.pop %v192
  %vm194 = vcmask 7168
  %195 = vst.msk [vmem:[%s5] sm:$0xff] %vm194, %v193
  // Predicated region
  $region22: #{mlp_forward.1} parent=0 // pred_check
    _
  $region23: #{mlp_forward.1} parent=0 // pred_check_branch
    %197 = sbr.rel (0) target = $region25
  $region24: #{mlp_forward.1} parent=0 // pred_region
    _
  $region25: #{mlp_forward.1} parent=0 // pred_fallthru
    _
  // Predicated region
  $region26: #{mlp_forward.1} parent=0 // pred_check
    _
  $region27: #{mlp_forward.1} parent=0 // pred_check_branch
    %199 = sbr.rel (0) target = $region29
  $region28: #{mlp_forward.1} parent=0 // pred_region
    _
  $region29: #{mlp_forward.1} parent=0 // pred_fallthru
    _

</llo_original>
